<compile_context>
chip_gen: v7x
topology: tpu7x:2x2x1
jax: 0.10.0
libtpu: 0.0.40
codegen_flags: <defaults>
</compile_context>

<pallas_src>
import jax
import jax.numpy as jnp
from jax.experimental import pallas as pl
from jax.experimental.pallas import tpu as pltpu

_TARGET_BLOCK_BYTES = 2 * 1024 * 1024      # ~2 MiB blocks (good on v5e/v6e/v7x)
_VMEM_LIMIT_BYTES = 32 * 1024 * 1024       # covers in+out double buffering everywhere
_LANE_CANDIDATES = (4096, 2048, 1024, 512, 256, 128)


def _identity_copy_kernel(x_ref, o_ref):
    # Pure tile copy: the only "compute" an identity has.
    o_ref[...] = x_ref[...]


def _choose_lane_width(total: int, last_dim: int) -> int:
    """Pick a lane-dense width (multiple of 128) dividing the flattened size.

    Prefer a width that also leaves >= 8 sublane rows; otherwise take the widest
    dividing candidate; otherwise fall back to the original trailing dim (a
    full-extent lane dim is always a legal block shape).
    """
    best = None
    for c in _LANE_CANDIDATES:
        if total % c == 0:
            if best is None:
                best = c
            if total // c >= 8:
                return c
    return best if best is not None else last_dim


def _choose_row_tile(rows: int, row_bytes: int) -> int:
    """Rows per block: ~_TARGET_BLOCK_BYTES, multiple of 8 (or full extent)."""
    r = max(1, _TARGET_BLOCK_BYTES // max(1, row_bytes))
    if r >= rows:
        return rows
    return min(rows, max(8, (r // 8) * 8))


def identity_first_stage_forward(x: jax.Array) -> jax.Array:
    """Pallas implementation of IdentityFirstStage.forward/encode/decode/quantize."""
    # NOTE: in production the cheapest identity is simply `return x`.
    if x.size == 0:
        return x

    orig_shape = x.shape
    total = int(x.size)
    last_dim = int(orig_shape[-1]) if x.ndim >= 1 else 1

    # Lane-dense 2D view of the flattened array (no padding, no tail slice).
    C = _choose_lane_width(total, last_dim)
    R = total // C
    x2 = x.reshape(R, C)

    itemsize = jnp.dtype(x.dtype).itemsize
    tile_r = _choose_row_tile(R, C * itemsize)
    grid_r = pl.cdiv(R, tile_r)

    # Give v7x's two TensorCores something to split when everything would
    # otherwise land in a single block.
    if grid_r == 1 and R >= 16:
        tile_r = max(8, ((R // 2) // 8) * 8)
        grid_r = pl.cdiv(R, tile_r)

    out = pl.pallas_call(
        _identity_copy_kernel,
        out_shape=jax.ShapeDtypeStruct((R, C), x.dtype),
        grid_spec=pltpu.PrefetchScalarGridSpec(
            num_scalar_prefetch=0,
            grid=(grid_r,),
            in_specs=[pl.BlockSpec((tile_r, C), lambda i: (i, 0))],
            out_specs=pl.BlockSpec((tile_r, C), lambda i: (i, 0)),
        ),
        compiler_params=pltpu.CompilerParams(
            dimension_semantics=("parallel",),
            vmem_limit_bytes=_VMEM_LIMIT_BYTES,
        ),
        cost_estimate=pl.CostEstimate(
            flops=0, transcendentals=0, bytes_accessed=2 * total * itemsize
        ),
        # Lets XLA alias/donate the input buffer to the output (halves HBM bytes
        # when the caller donates); values are identical so this is always safe.
        input_output_aliases={0: 0},
    )(x2)

    return out.reshape(orig_shape)


class IdentityFirstStage:
    """JAX/Pallas mirror of the PyTorch IdentityFirstStage module (no weights)."""

    def __init__(self, *args, vq_interface: bool = False, **kwargs):
        self.vq_interface = vq_interface  # bookkeeping only, as in the PyTorch module

    def encode(self, x, *args, **kwargs):
        return identity_first_stage_forward(x)

    def decode(self, x, *args, **kwargs):
        return identity_first_stage_forward(x)

    def quantize(self, x, *args, **kwargs):
        return identity_first_stage_forward(x)

    def __call__(self, x, *args, **kwargs):
        return identity_first_stage_forward(x)


if __name__ == "__main__":
    key = jax.random.PRNGKey(0)
    # NCHW latent-ish input: batch=2, channels=4, spatial=16x16.
    x = jax.random.normal(key, (2, 4, 16, 16), dtype=jnp.float32)

    model = IdentityFirstStage(vq_interface=False)
    y = jax.block_until_ready(model(x))

    assert y.shape == x.shape, (y.shape, x.shape)
    assert y.dtype == x.dtype, (y.dtype, x.dtype)
    assert bool(jnp.array_equal(y, x)), "identity kernel mismatch"

    # Exercise the other interface methods once too.
    z = jax.block_until_ready(model.decode(model.encode(x)))
    assert bool(jnp.array_equal(z, x))

    print("KERNEL_OK")
</pallas_src>

<mosaic_0001>
module attributes {stable_mosaic.version = 11 : i64} {
  func.func @_identity_copy_kernel(%arg0: i32, %arg1: memref<8x256xf32, #tpu.memory_space<vmem>>, %arg2: memref<8x256xf32, #tpu.memory_space<vmem>>) attributes {dimension_semantics = [#tpu.dimension_semantics<parallel>], iteration_bounds = array<i64: 1>, scalar_prefetch = 0 : i64, scratch_operands = 0 : i64, tpu.core_type = #tpu.core_type<tc>, window_params = [{transform_indices = @transform_0, window_bounds = array<i64: 8, 256>}, {transform_indices = @transform_1, window_bounds = array<i64: 8, 256>}]} {
    %c0 = arith.constant 0 : index
    %c0_0 = arith.constant 0 : index
    %0 = vector.load %arg1[%c0, %c0_0] : memref<8x256xf32, #tpu.memory_space<vmem>>, vector<8x256xf32>
    %c0_1 = arith.constant 0 : index
    %c0_2 = arith.constant 0 : index
    %1 = vector.load %arg2[%c0_1, %c0_2] : memref<8x256xf32, #tpu.memory_space<vmem>>, vector<8x256xf32>
    tpu.vector_store %arg2[%c0_1, %c0_2], %0 {strides = array<i32>} : memref<8x256xf32, #tpu.memory_space<vmem>>, vector<8x256xf32>,
    return
  }
  func.func @transform_0(%arg0: i32) -> (i32, i32) {
    %c0_i32 = arith.constant 0 : i32
    %c0_i32_0 = arith.constant 0 : i32
    return %arg0, %c0_i32 : i32, i32
  }
  func.func @transform_1(%arg0: i32) -> (i32, i32) {
    %c0_i32 = arith.constant 0 : i32
    %c0_i32_0 = arith.constant 0 : i32
    return %arg0, %c0_i32 : i32, i32
  }
}

</mosaic_0001>

<llo_original>
// kernel: tpu_custom_call.1
$region0: #{tpu_custom_call.1}
  #allocation0 [shape = 'u32[]', space=smem, size = 0x4, offset = 0x4, fixed_abs, tag = 'smem constant byte address 0x4 - core index']
  #allocation1 [shape = 'u32[144,128]{1,0:T(1,128)}', space=vmem, size = 0x12000, scoped, tag = 'internal scratch']
  %s0 = inlined_call_operand.hbm [shape: f32[8,256], index: 0, kind: input, shape index: {}, may-alias: {0,1}]
  %s1 = inlined_call_operand.hbm [shape: f32[8,256], index: 1, kind: output, shape index: {}, may-alias: {0,1}]
  %s2 = sld [smem:[#allocation0]]
  $region18: #{tpu_custom_call.1} parent=0
    _
  %s4 = ssub.s32 1, %s2
  %s5 = scalar_select 0, %s4, %s2
  $region1: #{tpu_custom_call.1} parent=0
    #allocation2 [shape = 'u8[8192]{0}', space=vmem, size = 0x2000, scoped, tag = 'input window, operand 0, single buffered']
    #allocation3 [shape = 's32[1]{0}', space=sflag, size = 0x4, scoped, tag = 'scoped memory for tpu_custom_call.1']
    #allocation4 [shape = 's32[1]{0}', space=sflag, size = 0x4, scoped, tag = 'scoped memory for tpu_custom_call.1']
    #allocation5 [shape = 'u8[8192]{0}', space=vmem, size = 0x2000, scoped, tag = 'output window, operand 0, single buffered']
    %6 = vsyncpa [#allocation3], 0
    %7 = vsyncpa [#allocation4], 0
    // Predicated region
    $region2: #{tpu_custom_call.1} parent=1 // pred_check
      _
    $region3: #{tpu_custom_call.1} parent=1 // pred_check_branch
      %9 = sbr.rel (0) target = $region5
    $region4: #{tpu_custom_call.1} parent=1 // pred_region
      %s11 = ssub.s32 256, 256
      %12 = vsyncadd [#allocation3], %s11
      %s14 = sshll.u32 [#allocation2], 4
      %s15 = int_to_ptr.vmem [resolvable:$true] %s14
      %17 = dma.hbm_to_vmem [thread:$0]  %s0, 256, %s15, [#allocation3]
    $region5: #{tpu_custom_call.1} parent=1 // pred_fallthru
      _
    // Predicated region
    $region6: #{tpu_custom_call.1} parent=1 // pred_check
      _
    $region7: #{tpu_custom_call.1} parent=1 // pred_check_branch
      %19 = sbr.rel (0) target = $region9
    $region8: #{tpu_custom_call.1} parent=1 // pred_region
      %20 = dma.done [#allocation3], 256
    $region9: #{tpu_custom_call.1} parent=1 // pred_fallthru
      _
    %v21 = vld [vmem:[#allocation2] sm:$0xff]
    %v22 = vld [vmem:[#allocation2 + $0x8] sm:$0xff]
    %23 = vst [vmem:[#allocation5] sm:$0xff] %v21
    %24 = vst [vmem:[#allocation5 + $0x8] sm:$0xff] %v22
    // Predicated region
    $region10: #{tpu_custom_call.1} parent=1 // pred_check
      _
    $region11: #{tpu_custom_call.1} parent=1 // pred_check_branch
      %26 = sbr.rel (0) target = $region13
    $region12: #{tpu_custom_call.1} parent=1 // pred_region
      %s28 = ssub.s32 256, 256
      %29 = vsyncadd [#allocation4], %s28
      %s31 = sshll.u32 [#allocation5], 4
      %s32 = int_to_ptr.vmem [resolvable:$true] %s31
      %34 = dma.vmem_to_hbm [thread:$0]  %s32, 256, %s1, [#allocation4]
    $region13: #{tpu_custom_call.1} parent=1 // pred_fallthru
      _
    // Predicated region
    $region14: #{tpu_custom_call.1} parent=1 // pred_check
      _
    $region15: #{tpu_custom_call.1} parent=1 // pred_check_branch
      %36 = sbr.rel (0) target = $region17
    $region16: #{tpu_custom_call.1} parent=1 // pred_region
      %37 = dma.done [#allocation4], 256
    $region17: #{tpu_custom_call.1} parent=1 // pred_fallthru
      _
    %38 = vsyncpa [#allocation3], 1
    %39 = vsyncpa [#allocation4], 1

</llo_original>
